<compile_context>
chip_gen: v5e
topology: v5e:2x2
jax: 0.10.0
libtpu: 0.0.40
codegen_flags: <defaults>
</compile_context>

<pallas_src>
import jax
import jax.numpy as jnp
from jax.experimental import pallas as pl
from jax.experimental.pallas import tpu as pltpu


def agtg_kernel(d_ref, pbd_ref, qbd_ref, b_ref, onescol_ref, onesrow_ref, eye_ref,
                x_ref, adj_ref, o_ref):
    f32 = jnp.float32
    # Scalar parameter d from SMEM (scalar path, no vreg lane-extract).
    d = d_ref[0, 0]

    # X @ Q for all T*G graphs in this block in one bf16 MXU matmul:
    #   (T*E, G*F) @ (G*F, G*E) -> (T*E, G*E)    (column block g -> X_g @ Q)
    xq = jnp.dot(x_ref[...], qbd_ref[...], preferred_element_type=f32)
    # kron(I_T, P) applies the shared P to every packed row block:
    #   (T*E, T*E) @ (T*E, G*E) -> (T*E, G*E)
    pxq = jnp.dot(pbd_ref[...], xq, preferred_element_type=f32)

    # |PXQ + b|  (b pre-broadcast to the full slab -> plain full-vreg VPU add)
    a_cor = jnp.abs(pxq + b_ref[...])
    # relu(A_cor + adj * d)   (adj is exact 0/1 in bf16; cast up for f32 VPU math)
    a = jnp.maximum(a_cor + adj_ref[...].astype(f32) * d, 0.0)

    eye = eye_ref[...]
    a_i = a + eye                                   # A_I = A + I (per-graph)

    # Per-graph row degrees, broadcast over that graph's column block:
    #   deg[t*E+i, g*E+k] = sum_j A_I_{(t,g)}[i, j]
    deg = jnp.dot(a_i, onescol_ref[...], preferred_element_type=f32)
    rs_row = jax.lax.rsqrt(deg)                     # D^{-1/2}[i] across its block

    # Column factor rs_g[k] broadcast down each row block: pick the per-graph
    # diagonal of rs_row and smear it over the block's rows with kron(I_T, 1s).
    rs_col = jnp.dot(onesrow_ref[...], rs_row * eye, preferred_element_type=f32)

    # A_norm = D^{-1/2} A_I D^{-1/2}; lane-dense (multiple-of-128) store.
    o_ref[...] = a_i * rs_row * rs_col


def agtg_forward(P, Q, b, d, X, adj, *, graphs_per_tile=8, batch_tiles_per_block=16):
    """Batched forward: X (B,E,F), adj (B,E,E) -> A_norm (B,E,E).

    graphs_per_tile (G): lane packing; keep G*E == 128 (don't grow G beyond it).
    batch_tiles_per_block (T): sublane packing; T*E = 256 fills v6e/v7x MXU,
    T*E = 128 fills v5e.  T is clamped so tiny batches aren't over-padded.
    """
    B, E, F = X.shape
    f32, bf16 = jnp.float32, jnp.bfloat16

    G = graphs_per_tile
    n_lane_tiles = -(-B // G)
    T = max(1, min(batch_tiles_per_block, n_lane_tiles))
    per_block = G * T
    n_blocks = -(-B // per_block)
    Bp = n_blocks * per_block
    assert (T * E) % 8 == 0 or n_blocks == 1, \
        "T*E must be a multiple of 8 when the batch is tiled over the grid"

    # Pad batch (padded graphs are harmless: A_I adds I, so deg >= 1).
    if Bp != B:
        X = jnp.concatenate([X, jnp.zeros((Bp - B, E, F), X.dtype)], axis=0)
        adj = jnp.concatenate([adj, jnp.zeros((Bp - B, E, E), adj.dtype)], axis=0)

    # Pack: graph index = blk*(T*G) + t*G + g  -> subblock (rows t*E:.., cols g*E:..).
    # bf16 halves the per-step HBM traffic (the kernel is bandwidth bound).
    x_pack = (X.reshape(n_blocks, T, G, E, F).transpose(0, 1, 3, 2, 4)
               .reshape(n_blocks * T * E, G * F).astype(bf16))
    adj_pack = (adj.reshape(n_blocks, T, G, E, E).transpose(0, 1, 3, 2, 4)
                 .reshape(n_blocks * T * E, G * E).astype(bf16))

    # Grid-invariant constants, built once on the host side.
    p_bd = jnp.kron(jnp.eye(T, dtype=f32), P.astype(f32))                     # (T*E, T*E)
    q_bd = jnp.kron(jnp.eye(G, dtype=f32), Q.astype(f32)).astype(bf16)        # (G*F, G*E)
    ones_col = jnp.kron(jnp.eye(G, dtype=f32), jnp.ones((E, E), f32))         # (G*E, G*E)
    ones_row = jnp.kron(jnp.eye(T, dtype=f32), jnp.ones((E, E), f32))         # (T*E, T*E)
    b_slab = jnp.tile(b.astype(f32), (T, G * E))                              # (T*E, G*E)
    eye_slab = jnp.tile(jnp.eye(E, dtype=f32), (T, G))                        # (T*E, G*E)
    d_smem = jnp.reshape(d, (1, 1)).astype(f32)

    TE, GE, GF = T * E, G * E, G * F
    flops = n_blocks * (2 * TE * GF * GE        # X @ blockdiag(Q)
                        + 2 * TE * TE * GE      # blockdiag(P) @ XQ
                        + 2 * TE * GE * GE      # degree reduction matmul
                        + 2 * TE * TE * GE)     # rs_col smear matmul
    bytes_accessed = (x_pack.size * 2 + adj_pack.size * 2 + n_blocks * TE * GE * 4
                      + (p_bd.size + ones_col.size + ones_row.size
                         + b_slab.size + eye_slab.size) * 4 + q_bd.size * 2)
    cost = pl.CostEstimate(flops=flops,
                           transcendentals=n_blocks * TE * GE,
                           bytes_accessed=bytes_accessed)

    out_pack = pl.pallas_call(
        agtg_kernel,
        out_shape=jax.ShapeDtypeStruct((n_blocks * TE, GE), f32),
        grid=(n_blocks,),
        in_specs=[
            pl.BlockSpec(memory_space=pltpu.MemorySpace.SMEM),    # d (scalar)
            pl.BlockSpec((TE, TE), lambda t: (0, 0)),             # kron(I_T, P)
            pl.BlockSpec((GF, GE), lambda t: (0, 0)),             # kron(I_G, Q)  bf16
            pl.BlockSpec((TE, GE), lambda t: (0, 0)),             # b slab
            pl.BlockSpec((GE, GE), lambda t: (0, 0)),             # kron(I_G, ones)
            pl.BlockSpec((TE, TE), lambda t: (0, 0)),             # kron(I_T, ones)
            pl.BlockSpec((TE, GE), lambda t: (0, 0)),             # packed identity
            pl.BlockSpec((TE, GF), lambda t: (t, 0)),             # X   (bf16, per block)
            pl.BlockSpec((TE, GE), lambda t: (t, 0)),             # adj (bf16, per block)
        ],
        out_specs=pl.BlockSpec((TE, GE), lambda t: (t, 0)),
        compiler_params=pltpu.CompilerParams(
            dimension_semantics=("parallel",)),                   # shards over v7x TCs
        cost_estimate=cost,
    )(d_smem, p_bd, q_bd, b_slab, ones_col, ones_row, eye_slab, x_pack, adj_pack)

    # Unpack (n_blocks*T*E, G*E) -> (B, E, E)
    out = (out_pack.reshape(n_blocks, T, E, G, E).transpose(0, 1, 3, 2, 4)
                   .reshape(Bp, E, E))
    return out[:B]


def reference_forward(P, Q, b, d, X, adj):
    """Pure-JAX batched reference mirroring the PyTorch module."""
    E = P.shape[0]
    eye = jnp.eye(E, dtype=jnp.float32)
    pxq = jnp.einsum('ij,bjf,fk->bik', P, X, Q,
                     precision=jax.lax.Precision.HIGHEST)
    a_cor = jnp.abs(pxq + b)                  # b (E,1) broadcasts across columns
    a = jax.nn.relu(a_cor + adj * d)
    a_i = a + eye
    deg = jnp.sum(a_i, axis=2)                # row sums per graph
    d_inv_sqrt = deg ** (-0.5)
    return a_i * d_inv_sqrt[:, :, None] * d_inv_sqrt[:, None, :]


if __name__ == "__main__":
    # nodes_dim E = 16, node_features_dim F = 32, batch of B = 40 graphs
    E, F, B = 16, 32, 40

    key = jax.random.PRNGKey(0)
    kP, kQ, kb, kd, kX, kA = jax.random.split(key, 6)

    # module parameters ("randn"-style init)
    P = jax.random.normal(kP, (E, E), dtype=jnp.float32)
    Q = jax.random.normal(kQ, (F, E), dtype=jnp.float32)
    b = jax.random.normal(kb, (E, 1), dtype=jnp.float32)
    d = jax.random.normal(kd, (1,), dtype=jnp.float32)

    # example batched inputs
    X = jax.random.normal(kX, (B, E, F), dtype=jnp.float32)
    adj = (jax.random.uniform(kA, (B, E, E)) > 0.5).astype(jnp.float32)
    adj = jnp.maximum(adj, jnp.swapaxes(adj, 1, 2))   # symmetric 0/1 adjacency

    # Small T here to exercise a multi-step grid + batch padding at demo sizes;
    # the production default (batch_tiles_per_block=16) fills a 256-row MXU pass.
    out = agtg_forward(P, Q, b, d, X, adj,
                       graphs_per_tile=8, batch_tiles_per_block=2)
    out = jax.block_until_ready(out)

    ref = reference_forward(P, Q, b, d[0], X, adj)
    assert out.shape == (B, E, E)
    # Tolerance covers bf16 quantization of X/Q feeding the MXU matmuls.
    assert jnp.allclose(out, ref, atol=5e-3, rtol=5e-3), "mismatch vs reference"

    print("KERNEL_OK")
</pallas_src>

<mosaic_0001>
module attributes {stable_mosaic.version = 11 : i64} {
  func.func @agtg_kernel(%arg0: i32, %arg1: memref<1x1xf32, #tpu.memory_space<smem>>, %arg2: memref<32x32xf32, #tpu.memory_space<vmem>>, %arg3: memref<256x128xbf16, #tpu.memory_space<vmem>>, %arg4: memref<32x128xf32, #tpu.memory_space<vmem>>, %arg5: memref<128x128xf32, #tpu.memory_space<vmem>>, %arg6: memref<32x32xf32, #tpu.memory_space<vmem>>, %arg7: memref<32x128xf32, #tpu.memory_space<vmem>>, %arg8: memref<32x256xbf16, #tpu.memory_space<vmem>>, %arg9: memref<32x128xbf16, #tpu.memory_space<vmem>>, %arg10: memref<32x128xf32, #tpu.memory_space<vmem>>) attributes {dimension_semantics = [#tpu.dimension_semantics<parallel>], iteration_bounds = array<i64: 3>, scalar_prefetch = 0 : i64, scratch_operands = 0 : i64, tpu.core_type = #tpu.core_type<tc>, window_params = [{transform_indices = @transform_0, window_bounds = array<i64: 1, 1>}, {pipeline_mode = #tpu.pipeline_mode<synchronous>, transform_indices = @transform_1, window_bounds = array<i64: 32, 32>}, {pipeline_mode = #tpu.pipeline_mode<synchronous>, transform_indices = @transform_2, window_bounds = array<i64: 256, 128>}, {pipeline_mode = #tpu.pipeline_mode<synchronous>, transform_indices = @transform_3, window_bounds = array<i64: 32, 128>}, {pipeline_mode = #tpu.pipeline_mode<synchronous>, transform_indices = @transform_4, window_bounds = array<i64: 128, 128>}, {pipeline_mode = #tpu.pipeline_mode<synchronous>, transform_indices = @transform_5, window_bounds = array<i64: 32, 32>}, {pipeline_mode = #tpu.pipeline_mode<synchronous>, transform_indices = @transform_6, window_bounds = array<i64: 32, 128>}, {transform_indices = @transform_7, window_bounds = array<i64: 32, 256>}, {transform_indices = @transform_8, window_bounds = array<i64: 32, 128>}, {transform_indices = @transform_9, window_bounds = array<i64: 32, 128>}]} {
    %c0 = arith.constant 0 : index
    %c0_0 = arith.constant 0 : index
    %0 = memref.load %arg1[%c0, %c0_0] : memref<1x1xf32, #tpu.memory_space<smem>>
    %c0_1 = arith.constant 0 : index
    %c0_2 = arith.constant 0 : index
    %1 = vector.load %arg8[%c0_1, %c0_2] : memref<32x256xbf16, #tpu.memory_space<vmem>>, vector<32x256xbf16>
    %c0_3 = arith.constant 0 : index
    %c0_4 = arith.constant 0 : index
    %2 = vector.load %arg3[%c0_3, %c0_4] : memref<256x128xbf16, #tpu.memory_space<vmem>>, vector<256x128xbf16>
    %cst = arith.constant dense<0.000000e+00> : vector<32x128xf32>
    %3 = tpu.matmul %1, %2, %cst {dimension_numbers = #tpu.dot_dimension_numbers<[1], [0], [0], [1], [0, 0, 1, 1], [], []>} : vector<32x256xbf16>, vector<256x128xbf16>, vector<32x128xf32> -> vector<32x128xf32>
    %c0_5 = arith.constant 0 : index
    %c0_6 = arith.constant 0 : index
    %4 = vector.load %arg2[%c0_5, %c0_6] : memref<32x32xf32, #tpu.memory_space<vmem>>, vector<32x32xf32>
    %cst_7 = arith.constant dense<0.000000e+00> : vector<32x128xf32>
    %5 = tpu.matmul %4, %3, %cst_7 {dimension_numbers = #tpu.dot_dimension_numbers<[1], [0], [0], [1], [0, 0, 1, 1], [], []>} : vector<32x32xf32>, vector<32x128xf32>, vector<32x128xf32> -> vector<32x128xf32>
    %c0_8 = arith.constant 0 : index
    %c0_9 = arith.constant 0 : index
    %6 = vector.load %arg4[%c0_8, %c0_9] : memref<32x128xf32, #tpu.memory_space<vmem>>, vector<32x128xf32>
    %7 = arith.addf %5, %6 : vector<32x128xf32>
    %8 = math.absf %7 : vector<32x128xf32>
    %c0_10 = arith.constant 0 : index
    %c0_11 = arith.constant 0 : index
    %9 = vector.load %arg9[%c0_10, %c0_11] : memref<32x128xbf16, #tpu.memory_space<vmem>>, vector<32x128xbf16>
    %10 = arith.extf %9 : vector<32x128xbf16> to vector<32x128xf32>
    %11 = vector.broadcast %0 : f32 to vector<32x128xf32>
    %12 = arith.mulf %10, %11 : vector<32x128xf32>
    %13 = arith.addf %8, %12 : vector<32x128xf32>
    %cst_12 = arith.constant 0.000000e+00 : f32
    %14 = vector.broadcast %cst_12 : f32 to vector<32x128xf32>
    %15 = arith.maximumf %13, %14 : vector<32x128xf32>
    %c0_13 = arith.constant 0 : index
    %c0_14 = arith.constant 0 : index
    %16 = vector.load %arg7[%c0_13, %c0_14] : memref<32x128xf32, #tpu.memory_space<vmem>>, vector<32x128xf32>
    %17 = arith.addf %15, %16 : vector<32x128xf32>
    %c0_15 = arith.constant 0 : index
    %c0_16 = arith.constant 0 : index
    %18 = vector.load %arg5[%c0_15, %c0_16] : memref<128x128xf32, #tpu.memory_space<vmem>>, vector<128x128xf32>
    %cst_17 = arith.constant dense<0.000000e+00> : vector<32x128xf32>
    %19 = tpu.matmul %17, %18, %cst_17 {dimension_numbers = #tpu.dot_dimension_numbers<[1], [0], [0], [1], [0, 0, 1, 1], [], []>} : vector<32x128xf32>, vector<128x128xf32>, vector<32x128xf32> -> vector<32x128xf32>
    %20 = math.rsqrt %19 : vector<32x128xf32>
    %c0_18 = arith.constant 0 : index
    %c0_19 = arith.constant 0 : index
    %21 = vector.load %arg6[%c0_18, %c0_19] : memref<32x32xf32, #tpu.memory_space<vmem>>, vector<32x32xf32>
    %22 = arith.mulf %20, %16 : vector<32x128xf32>
    %cst_20 = arith.constant dense<0.000000e+00> : vector<32x128xf32>
    %23 = tpu.matmul %21, %22, %cst_20 {dimension_numbers = #tpu.dot_dimension_numbers<[1], [0], [0], [1], [0, 0, 1, 1], [], []>} : vector<32x32xf32>, vector<32x128xf32>, vector<32x128xf32> -> vector<32x128xf32>
    %24 = arith.mulf %17, %20 : vector<32x128xf32>
    %25 = arith.mulf %24, %23 : vector<32x128xf32>
    %c0_21 = arith.constant 0 : index
    %c0_22 = arith.constant 0 : index
    %26 = vector.load %arg10[%c0_21, %c0_22] : memref<32x128xf32, #tpu.memory_space<vmem>>, vector<32x128xf32>
    tpu.vector_store %arg10[%c0_21, %c0_22], %25 {strides = array<i32>} : memref<32x128xf32, #tpu.memory_space<vmem>>, vector<32x128xf32>,
    return
  }
  func.func @transform_0(%arg0: i32) -> (i32, i32) {
    %c0_i32 = arith.constant 0 : i32
    %c0_i32_0 = arith.constant 0 : i32
    %c0_i32_1 = arith.constant 0 : i32
    return %c0_i32, %c0_i32_0 : i32, i32
  }
  func.func @transform_1(%arg0: i32) -> (i32, i32) {
    %c0_i32 = arith.constant 0 : i32
    %c0_i32_0 = arith.constant 0 : i32
    %c0_i32_1 = arith.constant 0 : i32
    return %c0_i32, %c0_i32_0 : i32, i32
  }
  func.func @transform_2(%arg0: i32) -> (i32, i32) {
    %c0_i32 = arith.constant 0 : i32
    %c0_i32_0 = arith.constant 0 : i32
    %c0_i32_1 = arith.constant 0 : i32
    return %c0_i32, %c0_i32_0 : i32, i32
  }
  func.func @transform_3(%arg0: i32) -> (i32, i32) {
    %c0_i32 = arith.constant 0 : i32
    %c0_i32_0 = arith.constant 0 : i32
    %c0_i32_1 = arith.constant 0 : i32
    return %c0_i32, %c0_i32_0 : i32, i32
  }
  func.func @transform_4(%arg0: i32) -> (i32, i32) {
    %c0_i32 = arith.constant 0 : i32
    %c0_i32_0 = arith.constant 0 : i32
    %c0_i32_1 = arith.constant 0 : i32
    return %c0_i32, %c0_i32_0 : i32, i32
  }
  func.func @transform_5(%arg0: i32) -> (i32, i32) {
    %c0_i32 = arith.constant 0 : i32
    %c0_i32_0 = arith.constant 0 : i32
    %c0_i32_1 = arith.constant 0 : i32
    return %c0_i32, %c0_i32_0 : i32, i32
  }
  func.func @transform_6(%arg0: i32) -> (i32, i32) {
    %c0_i32 = arith.constant 0 : i32
    %c0_i32_0 = arith.constant 0 : i32
    %c0_i32_1 = arith.constant 0 : i32
    return %c0_i32, %c0_i32_0 : i32, i32
  }
  func.func @transform_7(%arg0: i32) -> (i32, i32) {
    %c0_i32 = arith.constant 0 : i32
    %c0_i32_0 = arith.constant 0 : i32
    return %arg0, %c0_i32 : i32, i32
  }
  func.func @transform_8(%arg0: i32) -> (i32, i32) {
    %c0_i32 = arith.constant 0 : i32
    %c0_i32_0 = arith.constant 0 : i32
    return %arg0, %c0_i32 : i32, i32
  }
  func.func @transform_9(%arg0: i32) -> (i32, i32) {
    %c0_i32 = arith.constant 0 : i32
    %c0_i32_0 = arith.constant 0 : i32
    return %arg0, %c0_i32 : i32, i32
  }
}

</mosaic_0001>

<llo_original>
// kernel: tpu_custom_call.1
$region0: #{tpu_custom_call.1}
  #allocation0 [shape = 'u32[]', space=smem, size = 0x4, offset = 0x4, fixed_abs, tag = 'smem constant byte address 0x4 - core index']
  #allocation1 [shape = 'u32[72,128]{1,0:T(1,128)}', space=vmem, size = 0x9000, scoped, tag = 'internal scratch']
  #allocation2 [shape = 'f32[1,1]{1,0:T(1,128)S(6)}', space=smem, size = 0x200, scoped, tag = 'scoped memory for tpu_custom_call.1']
  %s0 = inlined_call_operand.<no memory space> [shape: f32[1,1], index: 0, kind: input, shape index: {}]
  %s1 = inlined_call_operand.hbm [shape: f32[32,32], index: 1, kind: input, shape index: {}]
  %s2 = inlined_call_operand.hbm [shape: bf16[256,128], index: 2, kind: input, shape index: {}]
  %s3 = inlined_call_operand.hbm [shape: f32[32,128], index: 3, kind: input, shape index: {}]
  %s4 = inlined_call_operand.hbm [shape: f32[128,128], index: 4, kind: input, shape index: {}]
  %s5 = inlined_call_operand.hbm [shape: f32[32,32], index: 5, kind: input, shape index: {}]
  %s6 = inlined_call_operand.hbm [shape: f32[32,128], index: 6, kind: input, shape index: {}]
  %s7 = inlined_call_operand.hbm [shape: bf16[96,256], index: 7, kind: input, shape index: {}]
  %s8 = inlined_call_operand.hbm [shape: bf16[96,128], index: 8, kind: input, shape index: {}]
  %s9 = inlined_call_operand.hbm [shape: f32[96,128], index: 9, kind: output, shape index: {}]
  %s10 = sld [smem:[#allocation0]]
  $region101: #{tpu_custom_call.1} parent=0
    _
  %s12 = ssub.s32 1, %s10
  %s13 = scalar_select 0, %s12, %s10
  %14 = sst [smem:[#allocation2]] %s0
  $region1: #{tpu_custom_call.1} parent=0
    #allocation3 [shape = 'u8[16384]{0}', space=vmem, size = 0x4000, scoped, tag = 'input window, operand 1, single buffered']
    #allocation4 [shape = 's32[2]{0}', space=sflag, size = 0x8, scoped, tag = 'scoped memory for tpu_custom_call.1']
    #allocation5 [shape = 's32[2]{0}', space=sflag, size = 0x8, scoped, tag = 'scoped memory for tpu_custom_call.1']
    #allocation6 [shape = 'u8[65536]{0}', space=vmem, size = 0x10000, scoped, tag = 'input window, operand 2, single buffered']
    #allocation7 [shape = 's32[1]{0}', space=sflag, size = 0x4, scoped, tag = 'scoped memory for tpu_custom_call.1']
    #allocation8 [shape = 'u8[16384]{0}', space=vmem, size = 0x4000, scoped, tag = 'input window, operand 3, single buffered']
    #allocation9 [shape = 'u8[65536]{0}', space=vmem, size = 0x10000, scoped, tag = 'input window, operand 4, single buffered']
    #allocation10 [shape = 's32[1]{0}', space=sflag, size = 0x4, scoped, tag = 'scoped memory for tpu_custom_call.1']
    #allocation11 [shape = 'u8[16384]{0}', space=vmem, size = 0x4000, scoped, tag = 'input window, operand 5, single buffered']
    #allocation12 [shape = 'u8[16384]{0}', space=vmem, size = 0x4000, scoped, tag = 'input window, operand 6, single buffered']
    #allocation13 [shape = 's32[1]{0}', space=sflag, size = 0x4, scoped, tag = 'scoped memory for tpu_custom_call.1']
    #allocation14 [shape = 'u8[32768]{0}', space=vmem, size = 0x8000, scoped, tag = 'input window, operand 7']
    #allocation15 [shape = 'u8[16384]{0}', space=vmem, size = 0x4000, scoped, tag = 'input window, operand 8']
    #allocation16 [shape = 'u8[32768]{0}', space=vmem, size = 0x8000, scoped, tag = 'output window, operand 0']
    %15 = vsyncpa [#allocation4], 0
    %16 = vsyncpa [#allocation7], 0
    %17 = vsyncpa [#allocation10], 0
    %18 = vsyncpa [#allocation13], 0
    %19 = vsyncpa [#allocation5], 0
    %s20 = scalar_lea.sflag [#allocation5], 1
    %21 = vsyncpa %s20, 0
    loop: start=0, step=1, limit=5
    $region2: #{tpu_custom_call.1} parent=1 // loop_pre_header
      _
    $region3: #{tpu_custom_call.1} parent=1 // loop_header
      %s23 = sphi 0, %s27
      %p24 = scmp.ge.s32.totalorder %s23, 5
      %s31 = sphi 0, %s31
      %s33 = sphi 0, %s31
      %s34 = sphi 0, %s33
      %s48 = sphi 0, %s34
      %s52 = sphi 0, %s52
      %s54 = sphi 0, %s52
      %s55 = sphi 0, %s54
      %s69 = sphi 0, %s55
      %s73 = sphi 0, %s73
      %s75 = sphi 0, %s73
      %s76 = sphi 0, %s75
      %s90 = sphi 0, %s76
      %s94 = sphi 0, %s94
      %s96 = sphi 0, %s94
      %s97 = sphi 0, %s96
      %s111 = sphi 0, %s97
      %s115 = sphi 0, %s115
      %s117 = sphi 0, %s115
      %s118 = sphi 0, %s117
      %s132 = sphi 0, %s118
      %s136 = sphi 0, %s136
      %s138 = sphi 0, %s136
      %s139 = sphi 0, %s138
      %s153 = sphi 0, %s139
      %s157 = sphi 0, %s157
      %s159 = sphi 0, %s157
      %s160 = sphi 0, %s159
      %s174 = sphi 0, %s160
      %s180 = sphi 0, %s182
      %s183 = sphi 0, %s180
      %s184 = sphi 0, %s183
      %s200 = sphi 0, %s184
      %s206 = sphi 0, %s208
      %s209 = sphi 0, %s206
      %s210 = sphi 0, %s209
      %s226 = sphi 0, %s210
      %s232 = sphi 0, %s234
      %s235 = sphi 0, %s232
      %s236 = sphi 0, %s235
      %s252 = sphi 0, %s236
    $region4: #{tpu_custom_call.1} parent=1 // loop_header_branch
      %26 = sbr.rel (%p24) target = $region8
    $region5: #{tpu_custom_call.1} parent=1 // loop_body
      %s28 = ssub.s32 %s23, 1
      %s29 = ssub.s32 %s23, 2
      %s30 = sadd.s32 %s23, 1
      %s32 = sadd.s32 %s31, 1
      %p35 = scmp.eq.s32.totalorder %s23, 2
      %p36 = scmp.ne.s32.totalorder %s31, %s33
      %p37 = scmp.eq.s32.totalorder %s23, 0
      %p38 = por %p36, %p37
      %p39 = scmp.ne.s32.totalorder %s31, %s33
      %p40 = scmp.eq.s32.totalorder %s28, 2
      %p41 = por %p39, %p40
      %p42 = scmp.ne.s32.totalorder %s33, %s34
      %p43 = scmp.eq.s32.totalorder %s28, 0
      %p44 = por %p42, %p43
      %p45 = scmp.ne.s32.totalorder %s33, %s34
      %p46 = scmp.eq.s32.totalorder %s29, 2
      %p47 = por %p45, %p46
      %p49 = scmp.ne.s32.totalorder %s34, %s48
      %p50 = scmp.eq.s32.totalorder %s29, 0
      %p51 = por %p49, %p50
      %s53 = sadd.s32 %s52, 1
      %p56 = scmp.eq.s32.totalorder %s23, 2
      %p57 = scmp.ne.s32.totalorder %s52, %s54
      %p58 = scmp.eq.s32.totalorder %s23, 0
      %p59 = por %p57, %p58
      %p60 = scmp.ne.s32.totalorder %s52, %s54
      %p61 = scmp.eq.s32.totalorder %s28, 2
      %p62 = por %p60, %p61
      %p63 = scmp.ne.s32.totalorder %s54, %s55
      %p64 = scmp.eq.s32.totalorder %s28, 0
      %p65 = por %p63, %p64
      %p66 = scmp.ne.s32.totalorder %s54, %s55
      %p67 = scmp.eq.s32.totalorder %s29, 2
      %p68 = por %p66, %p67
      %p70 = scmp.ne.s32.totalorder %s55, %s69
      %p71 = scmp.eq.s32.totalorder %s29, 0
      %p72 = por %p70, %p71
      %s74 = sadd.s32 %s73, 1
      %p77 = scmp.eq.s32.totalorder %s23, 2
      %p78 = scmp.ne.s32.totalorder %s73, %s75
      %p79 = scmp.eq.s32.totalorder %s23, 0
      %p80 = por %p78, %p79
      %p81 = scmp.ne.s32.totalorder %s73, %s75
      %p82 = scmp.eq.s32.totalorder %s28, 2
      %p83 = por %p81, %p82
      %p84 = scmp.ne.s32.totalorder %s75, %s76
      %p85 = scmp.eq.s32.totalorder %s28, 0
      %p86 = por %p84, %p85
      %p87 = scmp.ne.s32.totalorder %s75, %s76
      %p88 = scmp.eq.s32.totalorder %s29, 2
      %p89 = por %p87, %p88
      %p91 = scmp.ne.s32.totalorder %s76, %s90
      %p92 = scmp.eq.s32.totalorder %s29, 0
      %p93 = por %p91, %p92
      %s95 = sadd.s32 %s94, 1
      %p98 = scmp.eq.s32.totalorder %s23, 2
      %p99 = scmp.ne.s32.totalorder %s94, %s96
      %p100 = scmp.eq.s32.totalorder %s23, 0
      %p101 = por %p99, %p100
      %p102 = scmp.ne.s32.totalorder %s94, %s96
      %p103 = scmp.eq.s32.totalorder %s28, 2
      %p104 = por %p102, %p103
      %p105 = scmp.ne.s32.totalorder %s96, %s97
      %p106 = scmp.eq.s32.totalorder %s28, 0
      %p107 = por %p105, %p106
      %p108 = scmp.ne.s32.totalorder %s96, %s97
      %p109 = scmp.eq.s32.totalorder %s29, 2
      %p110 = por %p108, %p109
      %p112 = scmp.ne.s32.totalorder %s97, %s111
      %p113 = scmp.eq.s32.totalorder %s29, 0
      %p114 = por %p112, %p113
      %s116 = sadd.s32 %s115, 1
      %p119 = scmp.eq.s32.totalorder %s23, 2
      %p120 = scmp.ne.s32.totalorder %s115, %s117
      %p121 = scmp.eq.s32.totalorder %s23, 0
      %p122 = por %p120, %p121
      %p123 = scmp.ne.s32.totalorder %s115, %s117
      %p124 = scmp.eq.s32.totalorder %s28, 2
      %p125 = por %p123, %p124
      %p126 = scmp.ne.s32.totalorder %s117, %s118
      %p127 = scmp.eq.s32.totalorder %s28, 0
      %p128 = por %p126, %p127
      %p129 = scmp.ne.s32.totalorder %s117, %s118
      %p130 = scmp.eq.s32.totalorder %s29, 2
      %p131 = por %p129, %p130
      %p133 = scmp.ne.s32.totalorder %s118, %s132
      %p134 = scmp.eq.s32.totalorder %s29, 0
      %p135 = por %p133, %p134
      %s137 = sadd.s32 %s136, 1
      %p140 = scmp.eq.s32.totalorder %s23, 2
      %p141 = scmp.ne.s32.totalorder %s136, %s138
      %p142 = scmp.eq.s32.totalorder %s23, 0
      %p143 = por %p141, %p142
      %p144 = scmp.ne.s32.totalorder %s136, %s138
      %p145 = scmp.eq.s32.totalorder %s28, 2
      %p146 = por %p144, %p145
      %p147 = scmp.ne.s32.totalorder %s138, %s139
      %p148 = scmp.eq.s32.totalorder %s28, 0
      %p149 = por %p147, %p148
      %p150 = scmp.ne.s32.totalorder %s138, %s139
      %p151 = scmp.eq.s32.totalorder %s29, 2
      %p152 = por %p150, %p151
      %p154 = scmp.ne.s32.totalorder %s139, %s153
      %p155 = scmp.eq.s32.totalorder %s29, 0
      %p156 = por %p154, %p155
      %s158 = sadd.s32 %s157, 1
      %p161 = scmp.eq.s32.totalorder %s23, 2
      %p162 = scmp.ne.s32.totalorder %s157, %s159
      %p163 = scmp.eq.s32.totalorder %s23, 0
      %p164 = por %p162, %p163
      %p165 = scmp.ne.s32.totalorder %s157, %s159
      %p166 = scmp.eq.s32.totalorder %s28, 2
      %p167 = por %p165, %p166
      %p168 = scmp.ne.s32.totalorder %s159, %s160
      %p169 = scmp.eq.s32.totalorder %s28, 0
      %p170 = por %p168, %p169
      %p171 = scmp.ne.s32.totalorder %s159, %s160
      %p172 = scmp.eq.s32.totalorder %s29, 2
      %p173 = por %p171, %p172
      %p175 = scmp.ne.s32.totalorder %s160, %s174
      %p176 = scmp.eq.s32.totalorder %s29, 0
      %p177 = por %p175, %p176
      %s178 = ssub.s32 %s23, %s30
      %p179 = scmp.eq.s32.totalorder %s178, 0
      %s181 = sadd.s32 %s180, 1
      %s182 = scalar_select %p179, %s180, %s181
      %p185 = pneg %p179
      %p186 = scmp.eq.s32.totalorder %s23, 2
      %p187 = por %p185, %p186
      %p188 = scmp.ne.s32.totalorder %s180, %s183
      %p189 = scmp.eq.s32.totalorder %s23, 0
      %p190 = por %p188, %p189
      %p191 = scmp.ne.s32.totalorder %s180, %s183
      %p192 = scmp.eq.s32.totalorder %s28, 2
      %p193 = por %p191, %p192
      %p194 = scmp.ne.s32.totalorder %s183, %s184
      %p195 = scmp.eq.s32.totalorder %s28, 0
      %p196 = por %p194, %p195
      %p197 = scmp.ne.s32.totalorder %s183, %s184
      %p198 = scmp.eq.s32.totalorder %s29, 2
      %p199 = por %p197, %p198
      %p201 = scmp.ne.s32.totalorder %s184, %s200
      %p202 = scmp.eq.s32.totalorder %s29, 0
      %p203 = por %p201, %p202
      %s204 = ssub.s32 %s23, %s30
      %p205 = scmp.eq.s32.totalorder %s204, 0
      %s207 = sadd.s32 %s206, 1
      %s208 = scalar_select %p205, %s206, %s207
      %p211 = pneg %p205
      %p212 = scmp.eq.s32.totalorder %s23, 2
      %p213 = por %p211, %p212
      %p214 = scmp.ne.s32.totalorder %s206, %s209
      %p215 = scmp.eq.s32.totalorder %s23, 0
      %p216 = por %p214, %p215
      %p217 = scmp.ne.s32.totalorder %s206, %s209
      %p218 = scmp.eq.s32.totalorder %s28, 2
      %p219 = por %p217, %p218
      %p220 = scmp.ne.s32.totalorder %s209, %s210
      %p221 = scmp.eq.s32.totalorder %s28, 0
      %p222 = por %p220, %p221
      %p223 = scmp.ne.s32.totalorder %s209, %s210
      %p224 = scmp.eq.s32.totalorder %s29, 2
      %p225 = por %p223, %p224
      %p227 = scmp.ne.s32.totalorder %s210, %s226
      %p228 = scmp.eq.s32.totalorder %s29, 0
      %p229 = por %p227, %p228
      %s230 = ssub.s32 %s23, %s30
      %p231 = scmp.eq.s32.totalorder %s230, 0
      %s233 = sadd.s32 %s232, 1
      %s234 = scalar_select %p231, %s232, %s233
      %p237 = pneg %p231
      %p238 = scmp.eq.s32.totalorder %s23, 2
      %p239 = por %p237, %p238
      %p240 = scmp.ne.s32.totalorder %s232, %s235
      %p241 = scmp.eq.s32.totalorder %s23, 0
      %p242 = por %p240, %p241
      %p243 = scmp.ne.s32.totalorder %s232, %s235
      %p244 = scmp.eq.s32.totalorder %s28, 2
      %p245 = por %p243, %p244
      %p246 = scmp.ne.s32.totalorder %s235, %s236
      %p247 = scmp.eq.s32.totalorder %s28, 0
      %p248 = por %p246, %p247
      %p249 = scmp.ne.s32.totalorder %s235, %s236
      %p250 = scmp.eq.s32.totalorder %s29, 2
      %p251 = por %p249, %p250
      %p253 = scmp.ne.s32.totalorder %s236, %s252
      %p254 = scmp.eq.s32.totalorder %s29, 0
      %p255 = por %p253, %p254
      %p256 = scmp.le.s32.totalorder 1, %s23
      %p257 = scmp.lt.s32.totalorder %s23, 4
      %p258 = pnand %p256, %p257
      %p259 = pneg %p258
      // Predicated region
      $region9: #{tpu_custom_call.1} parent=5 // pred_check
        _
      $region10: #{tpu_custom_call.1} parent=5 // pred_check_branch
        %261 = sbr.rel (%p258) target = $region12
      $region11: #{tpu_custom_call.1} parent=5 // pred_region
        %s262 = ssub.s32 %s23, 1
        // Predicated region
        $region13: #{tpu_custom_call.1} parent=11 // pred_check
          %p263 = pneg %p44
        $region14: #{tpu_custom_call.1} parent=11 // pred_check_branch
          %265 = sbr.rel (%p263) target = $region16
        $region15: #{tpu_custom_call.1} parent=11 // pred_region
          _
        $region16: #{tpu_custom_call.1} parent=11 // pred_fallthru
          _
        // Predicated region
        $region17: #{tpu_custom_call.1} parent=11 // pred_check
          %p266 = pneg %p65
        $region18: #{tpu_custom_call.1} parent=11 // pred_check_branch
          %268 = sbr.rel (%p266) target = $region20
        $region19: #{tpu_custom_call.1} parent=11 // pred_region
          %270 = vsyncadd [#allocation4], 0
          %s271 = sshll.u32 %s1, 4
          %s272 = int_to_ptr.hbm [resolvable:$true] %s271
          %s273 = sshll.u32 [#allocation3], 4
          %s274 = int_to_ptr.vmem [resolvable:$true] %s273
          %279 = dma.hbm_to_vmem [thread:$0]  %s272, 512, %s274, [#allocation4], 128, 128, 8
        $region20: #{tpu_custom_call.1} parent=11 // pred_fallthru
          _
        // Predicated region
        $region21: #{tpu_custom_call.1} parent=11 // pred_check
          %p280 = pneg %p86
        $region22: #{tpu_custom_call.1} parent=11 // pred_check_branch
          %282 = sbr.rel (%p280) target = $region24
        $region23: #{tpu_custom_call.1} parent=11 // pred_region
          %284 = vsyncadd [#allocation7], 0
          %s285 = sshll.u32 %s2, 4
          %s286 = int_to_ptr.hbm [resolvable:$true] %s285
          %s287 = sshll.u32 [#allocation6], 4
          %s288 = int_to_ptr.vmem [resolvable:$true] %s287
          %293 = dma.hbm_to_vmem [thread:$0]  %s286, 2048, %s288, [#allocation7], 64, 64, 4
        $region24: #{tpu_custom_call.1} parent=11 // pred_fallthru
          _
        // Predicated region
        $region25: #{tpu_custom_call.1} parent=11 // pred_check
          %p294 = pneg %p107
        $region26: #{tpu_custom_call.1} parent=11 // pred_check_branch
          %296 = sbr.rel (%p294) target = $region28
        $region27: #{tpu_custom_call.1} parent=11 // pred_region
          %298 = vsyncadd [#allocation7], 0
          %s299 = sshll.u32 %s3, 4
          %s300 = int_to_ptr.hbm [resolvable:$true] %s299
          %s301 = sshll.u32 [#allocation8], 4
          %s302 = int_to_ptr.vmem [resolvable:$true] %s301
          %307 = dma.hbm_to_vmem [thread:$0]  %s300, 512, %s302, [#allocation7], 128, 128, 8
        $region28: #{tpu_custom_call.1} parent=11 // pred_fallthru
          _
        // Predicated region
        $region29: #{tpu_custom_call.1} parent=11 // pred_check
          %p308 = pneg %p128
        $region30: #{tpu_custom_call.1} parent=11 // pred_check_branch
          %310 = sbr.rel (%p308) target = $region32
        $region31: #{tpu_custom_call.1} parent=11 // pred_region
          %312 = vsyncadd [#allocation10], 0
          %s313 = sshll.u32 %s4, 4
          %s314 = int_to_ptr.hbm [resolvable:$true] %s313
          %s315 = sshll.u32 [#allocation9], 4
          %s316 = int_to_ptr.vmem [resolvable:$true] %s315
          %321 = dma.hbm_to_vmem [thread:$0]  %s314, 2048, %s316, [#allocation10], 128, 128, 8
        $region32: #{tpu_custom_call.1} parent=11 // pred_fallthru
          _
        // Predicated region
        $region33: #{tpu_custom_call.1} parent=11 // pred_check
          %p322 = pneg %p149
        $region34: #{tpu_custom_call.1} parent=11 // pred_check_branch
          %324 = sbr.rel (%p322) target = $region36
        $region35: #{tpu_custom_call.1} parent=11 // pred_region
          %326 = vsyncadd [#allocation10], 0
          %s327 = sshll.u32 %s5, 4
          %s328 = int_to_ptr.hbm [resolvable:$true] %s327
          %s329 = sshll.u32 [#allocation11], 4
          %s330 = int_to_ptr.vmem [resolvable:$true] %s329
          %335 = dma.hbm_to_vmem [thread:$0]  %s328, 512, %s330, [#allocation10], 128, 128, 8
        $region36: #{tpu_custom_call.1} parent=11 // pred_fallthru
          _
        // Predicated region
        $region37: #{tpu_custom_call.1} parent=11 // pred_check
          %p336 = pneg %p170
        $region38: #{tpu_custom_call.1} parent=11 // pred_check_branch
          %338 = sbr.rel (%p336) target = $region40
        $region39: #{tpu_custom_call.1} parent=11 // pred_region
          %340 = vsyncadd [#allocation13], 0
          %s341 = sshll.u32 %s6, 4
          %s342 = int_to_ptr.hbm [resolvable:$true] %s341
          %s343 = sshll.u32 [#allocation12], 4
          %s344 = int_to_ptr.vmem [resolvable:$true] %s343
          %349 = dma.hbm_to_vmem [thread:$0]  %s342, 512, %s344, [#allocation13], 128, 128, 8
        $region40: #{tpu_custom_call.1} parent=11 // pred_fallthru
          _
      $region12: #{tpu_custom_call.1} parent=5 // pred_fallthru
        _
      %p350 = scmp.lt.s32.totalorder %s23, 3
      // Predicated region
      $region41: #{tpu_custom_call.1} parent=5 // pred_check
        %p351 = pneg %p350
      $region42: #{tpu_custom_call.1} parent=5 // pred_check_branch
        %353 = sbr.rel (%p351) target = $region44
      $region43: #{tpu_custom_call.1} parent=5 // pred_region
        // Predicated region
        $region45: #{tpu_custom_call.1} parent=43 // pred_check
          %p354 = pneg %p190
        $region46: #{tpu_custom_call.1} parent=43 // pred_check_branch
          %356 = sbr.rel (%p354) target = $region48
        $region47: #{tpu_custom_call.1} parent=43 // pred_region
          %s357 = sand.u32 %s23, 1
          %s358 = scalar_lea.sflag [#allocation4], %s357
          %s359 = sand.u32 %s180, 1
          %s360 = smul.addr %s359, 32
          %s361 = scalar_lea.vmem [#allocation14], %s360
          %s362 = smul.u32 4, %s23
          %364 = vsyncadd %s358, 0
          %s365 = smul.addr %s362, 2
          %s366 = smul.addr %s365, 4
          %s367 = scalar_lea.hbm %s7, %s366
          %s368 = sshll.u32 %s367, 4
          %s369 = int_to_ptr.hbm [resolvable:$true] %s368
          %s370 = sshll.u32 %s361, 4
          %s371 = int_to_ptr.vmem [resolvable:$true] %s370
          %376 = dma.hbm_to_vmem [thread:$0]  %s369, 512, %s371, %s358, 128, 128, 8
        $region48: #{tpu_custom_call.1} parent=43 // pred_fallthru
          _
        // Predicated region
        $region49: #{tpu_custom_call.1} parent=43 // pred_check
          %p377 = pneg %p216
        $region50: #{tpu_custom_call.1} parent=43 // pred_check_branch
          %379 = sbr.rel (%p377) target = $region52
        $region51: #{tpu_custom_call.1} parent=43 // pred_region
          %s380 = sand.u32 %s23, 1
          %s381 = scalar_lea.sflag [#allocation4], %s380
          %s382 = sand.u32 %s206, 1
          %s383 = smul.addr %s382, 16
          %s384 = scalar_lea.vmem [#allocation15], %s383
          %s385 = smul.u32 4, %s23
          %387 = vsyncadd %s381, 0
          %s388 = smul.addr %s385, 4
          %s389 = scalar_lea.hbm %s8, %s388
          %s390 = sshll.u32 %s389, 4
          %s391 = int_to_ptr.hbm [resolvable:$true] %s390
          %s392 = sshll.u32 %s384, 4
          %s393 = int_to_ptr.vmem [resolvable:$true] %s392
          %398 = dma.hbm_to_vmem [thread:$0]  %s391, 256, %s393, %s381, 64, 64, 4
        $region52: #{tpu_custom_call.1} parent=43 // pred_fallthru
          _
      $region44: #{tpu_custom_call.1} parent=5 // pred_fallthru
        _
      %p399 = scmp.le.s32.totalorder 1, %s23
      %p400 = scmp.lt.s32.totalorder %s23, 4
      %p401 = pnand %p399, %p400
      %p402 = pneg %p401
      // Predicated region
      $region53: #{tpu_custom_call.1} parent=5 // pred_check
        _
      $region54: #{tpu_custom_call.1} parent=5 // pred_check_branch
        %404 = sbr.rel (%p401) target = $region56
      $region55: #{tpu_custom_call.1} parent=5 // pred_region
        %s405 = ssub.s32 %s23, 1
        // Predicated region
        $region57: #{tpu_custom_call.1} parent=55 // pred_check
          %p406 = pneg %p65
        $region58: #{tpu_custom_call.1} parent=55 // pred_check_branch
          %408 = sbr.rel (%p406) target = $region60
        $region59: #{tpu_custom_call.1} parent=55 // pred_region
          %410 = dma.done [#allocation4], 512
        $region60: #{tpu_custom_call.1} parent=55 // pred_fallthru
          _
        // Predicated region
        $region61: #{tpu_custom_call.1} parent=55 // pred_check
          %p411 = pneg %p86
        $region62: #{tpu_custom_call.1} parent=55 // pred_check_branch
          %413 = sbr.rel (%p411) target = $region64
        $region63: #{tpu_custom_call.1} parent=55 // pred_region
          %415 = dma.done [#allocation7], 2048
        $region64: #{tpu_custom_call.1} parent=55 // pred_fallthru
          _
        // Predicated region
        $region65: #{tpu_custom_call.1} parent=55 // pred_check
          %p416 = pneg %p107
        $region66: #{tpu_custom_call.1} parent=55 // pred_check_branch
          %418 = sbr.rel (%p416) target = $region68
        $region67: #{tpu_custom_call.1} parent=55 // pred_region
          %420 = dma.done [#allocation7], 512
        $region68: #{tpu_custom_call.1} parent=55 // pred_fallthru
          _
        // Predicated region
        $region69: #{tpu_custom_call.1} parent=55 // pred_check
          %p421 = pneg %p128
        $region70: #{tpu_custom_call.1} parent=55 // pred_check_branch
          %423 = sbr.rel (%p421) target = $region72
        $region71: #{tpu_custom_call.1} parent=55 // pred_region
          %425 = dma.done [#allocation10], 2048
        $region72: #{tpu_custom_call.1} parent=55 // pred_fallthru
          _
        // Predicated region
        $region73: #{tpu_custom_call.1} parent=55 // pred_check
          %p426 = pneg %p149
        $region74: #{tpu_custom_call.1} parent=55 // pred_check_branch
          %428 = sbr.rel (%p426) target = $region76
        $region75: #{tpu_custom_call.1} parent=55 // pred_region
          %430 = dma.done [#allocation10], 512
        $region76: #{tpu_custom_call.1} parent=55 // pred_fallthru
          _
        // Predicated region
        $region77: #{tpu_custom_call.1} parent=55 // pred_check
          %p431 = pneg %p170
        $region78: #{tpu_custom_call.1} parent=55 // pred_check_branch
          %433 = sbr.rel (%p431) target = $region80
        $region79: #{tpu_custom_call.1} parent=55 // pred_region
          %435 = dma.done [#allocation13], 512
        $region80: #{tpu_custom_call.1} parent=55 // pred_fallthru
          _
        %s436 = sand.u32 %s28, 1
        %s437 = scalar_lea.sflag [#allocation4], %s436
        %s438 = sand.u32 %s183, 1
        %s439 = smul.addr %s438, 32
        %s440 = scalar_lea.vmem [#allocation14], %s439
        // Predicated region
        $region81: #{tpu_custom_call.1} parent=55 // pred_check
          %p441 = pneg %p196
        $region82: #{tpu_custom_call.1} parent=55 // pred_check_branch
          %443 = sbr.rel (%p441) target = $region84
        $region83: #{tpu_custom_call.1} parent=55 // pred_region
          %445 = dma.done %s437, 512
        $region84: #{tpu_custom_call.1} parent=55 // pred_fallthru
          _
        %s446 = sand.u32 %s28, 1
        %s447 = scalar_lea.sflag [#allocation4], %s446
        %s448 = sand.u32 %s209, 1
        %s449 = smul.addr %s448, 16
        %s450 = scalar_lea.vmem [#allocation15], %s449
        // Predicated region
        $region85: #{tpu_custom_call.1} parent=55 // pred_check
          %p451 = pneg %p222
        $region86: #{tpu_custom_call.1} parent=55 // pred_check_branch
          %453 = sbr.rel (%p451) target = $region88
        $region87: #{tpu_custom_call.1} parent=55 // pred_region
          %455 = dma.done %s447, 256
        $region88: #{tpu_custom_call.1} parent=55 // pred_fallthru
          _
        %p456 = pneg %p44
        %p457 = pneg %p41
        %p458 = pneg %p65
        %p459 = pneg %p62
        %p460 = pneg %p86
        %p461 = pneg %p83
        %p462 = pneg %p107
        %p463 = pneg %p104
        %p464 = pneg %p128
        %p465 = pneg %p125
        %p466 = pneg %p149
        %p467 = pneg %p146
        %p468 = pneg %p170
        %p469 = pneg %p167
        %s470 = sand.u32 %s28, 1
        %s471 = scalar_lea.sflag [#allocation4], %s470
        %s472 = sand.u32 %s183, 1
        %s473 = smul.addr %s472, 32
        %s474 = scalar_lea.vmem [#allocation14], %s473
        %p475 = pneg %p196
        %p476 = pneg %p193
        %s477 = sand.u32 %s28, 1
        %s478 = scalar_lea.sflag [#allocation4], %s477
        %s479 = sand.u32 %s209, 1
        %s480 = smul.addr %s479, 16
        %s481 = scalar_lea.vmem [#allocation15], %s480
        %p482 = pneg %p222
        %p483 = pneg %p219
        %p484 = pneg %p248
        %p485 = pneg %p245
        %s486 = sand.u32 %s235, 1
        %s487 = scalar_lea.sflag [#allocation5], %s486
        %s488 = sand.u32 %s235, 1
        %s489 = smul.addr %s488, 32
        %s490 = scalar_lea.vmem [#allocation16], %s489
        %s491 = smul.u32 4, %s28
        %s492 = smul.u32 4, %s28
        %s493 = smul.u32 4, %s28
        %s494 = sld [smem:[#allocation2]]
        %v495 = vld [vmem:[%s440] sm:$0xff]
        %v496 = vld [vmem:[%s440 + $0x8] sm:$0xff]
        %v497 = vld [vmem:[%s440 + $0x10] sm:$0xff]
        %v498 = vld [vmem:[%s440 + $0x18] sm:$0xff]
        %v499 = vld [vmem:[#allocation6] sm:$0xf]
        %v500 = vld [vmem:[#allocation6 + $0x4] sm:$0xf]
        %v501 = vld [vmem:[#allocation6 + $0x8] sm:$0xf]
        %v502 = vld [vmem:[#allocation6 + $0xc] sm:$0xf]
        %v503 = vld [vmem:[#allocation6 + $0x10] sm:$0xf]
        %v504 = vld [vmem:[#allocation6 + $0x14] sm:$0xf]
        %v505 = vld [vmem:[#allocation6 + $0x18] sm:$0xf]
        %v506 = vld [vmem:[#allocation6 + $0x1c] sm:$0xf]
        %v507 = vld [vmem:[#allocation6 + $0x20] sm:$0xf]
        %v508 = vld [vmem:[#allocation6 + $0x24] sm:$0xf]
        %v509 = vld [vmem:[#allocation6 + $0x28] sm:$0xf]
        %v510 = vld [vmem:[#allocation6 + $0x2c] sm:$0xf]
        %v511 = vld [vmem:[#allocation6 + $0x30] sm:$0xf]
        %v512 = vld [vmem:[#allocation6 + $0x34] sm:$0xf]
        %v513 = vld [vmem:[#allocation6 + $0x38] sm:$0xf]
        %v514 = vld [vmem:[#allocation6 + $0x3c] sm:$0xf]
        %v515 = vld [vmem:[#allocation6 + $0x40] sm:$0xf]
        %v516 = vld [vmem:[#allocation6 + $0x44] sm:$0xf]
        %v517 = vld [vmem:[#allocation6 + $0x48] sm:$0xf]
        %v518 = vld [vmem:[#allocation6 + $0x4c] sm:$0xf]
        %v519 = vld [vmem:[#allocation6 + $0x50] sm:$0xf]
        %v520 = vld [vmem:[#allocation6 + $0x54] sm:$0xf]
        %v521 = vld [vmem:[#allocation6 + $0x58] sm:$0xf]
        %v522 = vld [vmem:[#allocation6 + $0x5c] sm:$0xf]
        %v523 = vld [vmem:[#allocation6 + $0x60] sm:$0xf]
        %v524 = vld [vmem:[#allocation6 + $0x64] sm:$0xf]
        %v525 = vld [vmem:[#allocation6 + $0x68] sm:$0xf]
        %v526 = vld [vmem:[#allocation6 + $0x6c] sm:$0xf]
        %v527 = vld [vmem:[#allocation6 + $0x70] sm:$0xf]
        %v528 = vld [vmem:[#allocation6 + $0x74] sm:$0xf]
        %v529 = vld [vmem:[#allocation6 + $0x78] sm:$0xf]
        %v530 = vld [vmem:[#allocation6 + $0x7c] sm:$0xf]
        %v535 = vunpack.c.l.b16 %v495
        %v536 = vunpack.c.h.b16 %v495
        %v537 = vunpack.c.l.b16 %v496
        %v538 = vunpack.c.h.b16 %v496
        %v539 = vunpack.c.l.b16 %v497
        %v540 = vunpack.c.h.b16 %v497
        %v541 = vunpack.c.l.b16 %v498
        %v542 = vunpack.c.h.b16 %v498
        %v543 = vpack.c.b16 %v537, %v535
        %v544 = vpack.c.b16 %v538, %v536
        %v545 = vpack.c.b16 %v541, %v539
        %v546 = vpack.c.b16 %v542, %v540
        %v583 = vunpack.c.l.b16 %v499
        %v584 = vunpack.c.l.b16 %v500
        %v585 = vunpack.c.l.b16 %v501
        %v586 = vunpack.c.l.b16 %v502
        %v587 = vunpack.c.l.b16 %v503
        %v588 = vunpack.c.l.b16 %v504
        %v589 = vunpack.c.l.b16 %v505
        %v590 = vunpack.c.l.b16 %v506
        %v591 = vunpack.c.l.b16 %v507
        %v592 = vunpack.c.l.b16 %v508
        %v593 = vunpack.c.l.b16 %v509
        %v594 = vunpack.c.l.b16 %v510
        %v595 = vunpack.c.l.b16 %v511
        %v596 = vunpack.c.l.b16 %v512
        %v597 = vunpack.c.l.b16 %v513
        %v598 = vunpack.c.l.b16 %v514
        %v599 = vunpack.c.l.b16 %v515
        %v600 = vunpack.c.l.b16 %v516
        %v601 = vunpack.c.l.b16 %v517
        %v602 = vunpack.c.l.b16 %v518
        %v603 = vunpack.c.l.b16 %v519
        %v604 = vunpack.c.l.b16 %v520
        %v605 = vunpack.c.l.b16 %v521
        %v606 = vunpack.c.l.b16 %v522
        %v607 = vunpack.c.l.b16 %v523
        %v608 = vunpack.c.l.b16 %v524
        %v609 = vunpack.c.l.b16 %v525
        %v610 = vunpack.c.l.b16 %v526
        %v611 = vunpack.c.l.b16 %v527
        %v612 = vunpack.c.l.b16 %v528
        %v613 = vunpack.c.l.b16 %v529
        %v614 = vunpack.c.l.b16 %v530
        %v615 = vpack.c.b16 %v584, %v583
        %v616 = vpack.c.b16 %v586, %v585
        %v617 = vpack.c.b16 %v588, %v587
        %v618 = vpack.c.b16 %v590, %v589
        %v619 = vpack.c.b16 %v592, %v591
        %v620 = vpack.c.b16 %v594, %v593
        %v621 = vpack.c.b16 %v596, %v595
        %v622 = vpack.c.b16 %v598, %v597
        %v623 = vpack.c.b16 %v600, %v599
        %v624 = vpack.c.b16 %v602, %v601
        %v625 = vpack.c.b16 %v604, %v603
        %v626 = vpack.c.b16 %v606, %v605
        %v627 = vpack.c.b16 %v608, %v607
        %v628 = vpack.c.b16 %v610, %v609
        %v629 = vpack.c.b16 %v612, %v611
        %v630 = vpack.c.b16 %v614, %v613
        %647 = vmatpush.bf16.msra.mxu0 %v622
        %648 = vmatpush.bf16.msra.mxu0 %v621
        %649 = vmatpush.bf16.msra.mxu0 %v620
        %650 = vmatpush.bf16.msra.mxu0 %v619
        %651 = vmatpush.bf16.msra.mxu0 %v618
        %652 = vmatpush.bf16.msra.mxu0 %v617
        %653 = vmatpush.bf16.msra.mxu0 %v616
        %654 = vmatpush.bf16.msra.mxu0 %v615
        %655 = vmatmul.bf16.gmra.mxu0 %v543
        %v656 = vpop.f32.mrf.mxu0
        %v657 = vadd.f32 0.0, %v656
        %v658 = vpop.f32.mrf.mxu0
        %v659 = vadd.f32 0.0, %v658
        %660 = vmatmul.bf16.gmra.mxu0 %v545
        %v661 = vpop.f32.mrf.mxu0
        %v662 = vadd.f32 0.0, %v661
        %v663 = vpop.f32.mrf.mxu0
        %v664 = vadd.f32 0.0, %v663
        %665 = vdwg.mxu0
        %666 = vmatpush.bf16.msra.mxu0 %v630
        %667 = vmatpush.bf16.msra.mxu0 %v629
        %668 = vmatpush.bf16.msra.mxu0 %v628
        %669 = vmatpush.bf16.msra.mxu0 %v627
        %670 = vmatpush.bf16.msra.mxu0 %v626
        %671 = vmatpush.bf16.msra.mxu0 %v625
        %672 = vmatpush.bf16.msra.mxu0 %v624
        %673 = vmatpush.bf16.msra.mxu0 %v623
        %674 = vmatmul.bf16.gmra.mxu0 %v544
        %v675 = vpop.f32.mrf.mxu0
        %v676 = vadd.f32 %v657, %v675
        %v677 = vpop.f32.mrf.mxu0
        %v678 = vadd.f32 %v659, %v677
        %679 = vmatmul.bf16.gmra.mxu0 %v546
        %v680 = vpop.f32.mrf.mxu0
        %v681 = vadd.f32 %v662, %v680
        %v682 = vpop.f32.mrf.mxu0
        %v683 = vadd.f32 %v664, %v682
        %684 = vdwg.mxu0
        %v685 = vld [vmem:[#allocation3] sm:$0xff]
        %v686 = vld [vmem:[#allocation3 + $0x8] sm:$0xff]
        %v687 = vld [vmem:[#allocation3 + $0x10] sm:$0xff]
        %v688 = vld [vmem:[#allocation3 + $0x18] sm:$0xff]
        %v689 = vld [vmem:[#allocation8] sm:$0xff]
        %v690 = vld [vmem:[#allocation8 + $0x8] sm:$0xff]
        %v691 = vld [vmem:[#allocation8 + $0x10] sm:$0xff]
        %v692 = vld [vmem:[#allocation8 + $0x18] sm:$0xff]
        %vm693 = vcmask 261120
        %v695 = vsel %vm693, %v685, 0
        %v698 = vsel %vm693, %v686, 0
        %v701 = vsel %vm693, %v687, 0
        %v704 = vsel %vm693, %v688, 0
        %706 = vmatpush.msra.mxu0 0.0
        %707 = vmatpush.msra.mxu0 0.0
        %708 = vmatpush.msra.mxu0 0.0
        %709 = vmatpush.msra.mxu0 0.0
        %710 = vmatpush.msra.mxu0 0.0
        %711 = vmatpush.msra.mxu0 0.0
        %712 = vmatpush.msra.mxu0 0.0
        %713 = vmatpush.msra.mxu0 0.0
        %714 = vmatpush.msra.mxu0 0.0
        %715 = vmatpush.msra.mxu0 0.0
        %716 = vmatpush.msra.mxu0 0.0
        %717 = vmatpush.msra.mxu0 0.0
        %718 = vmatpush.msra.mxu0 %v683
        %719 = vmatpush.msra.mxu0 %v681
        %720 = vmatpush.msra.mxu0 %v678
        %721 = vmatpush.msra.mxu0 %v676
        %722 = vmatmul.f32.gmra.mxu0 %v695
        %v723 = vpop.f32.mrf.mxu0
        %v724 = vadd.f32 %v689, %v723
        %725 = vmatmul.f32.gmra.mxu0 %v698
        %v726 = vpop.f32.mrf.mxu0
        %v727 = vadd.f32 %v690, %v726
        %728 = vmatmul.f32.gmra.mxu0 %v701
        %v729 = vpop.f32.mrf.mxu0
        %v730 = vadd.f32 %v691, %v729
        %731 = vmatmul.f32.gmra.mxu0 %v704
        %v732 = vpop.f32.mrf.mxu0
        %v733 = vadd.f32 %v692, %v732
        %734 = vdwg.mxu0
        %v735 = vand.u32 2147483647, %v724
        %v736 = vand.u32 2147483647, %v727
        %v737 = vand.u32 2147483647, %v730
        %v738 = vand.u32 2147483647, %v733
        %v739 = vld [vmem:[%s450] sm:$0xf]
        %v740 = vld [vmem:[%s450 + $0x4] sm:$0xf]
        %v741 = vld [vmem:[%s450 + $0x8] sm:$0xf]
        %v742 = vld [vmem:[%s450 + $0xc] sm:$0xf]
        %v743 = vunpack.c.l.bf16 %v739
        %v744 = vunpack.c.l.bf16 %v740
        %v745 = vunpack.c.l.bf16 %v741
        %v746 = vunpack.c.l.bf16 %v742
        %v747 = vstv %s494
        %v748 = vmul.f32 %v743, %v747
        %v749 = vmul.f32 %v744, %v747
        %v750 = vmul.f32 %v745, %v747
        %v751 = vmul.f32 %v746, %v747
        %v752 = vadd.f32 %v735, %v748
        %v753 = vadd.f32 %v736, %v749
        %v754 = vadd.f32 %v737, %v750
        %v755 = vadd.f32 %v738, %v751
        %v756 = vmax.f32 %v752, 0.0
        %v757 = vmax.f32 %v753, 0.0
        %v758 = vmax.f32 %v754, 0.0
        %v759 = vmax.f32 %v755, 0.0
        %v760 = vld [vmem:[#allocation12] sm:$0xff]
        %v761 = vld [vmem:[#allocation12 + $0x8] sm:$0xff]
        %v762 = vld [vmem:[#allocation12 + $0x10] sm:$0xff]
        %v763 = vld [vmem:[#allocation12 + $0x18] sm:$0xff]
        %v764 = vadd.f32 %v756, %v760
        %v765 = vadd.f32 %v757, %v761
        %v766 = vadd.f32 %v758, %v762
        %v767 = vadd.f32 %v759, %v763
        %v768 = vld [vmem:[#allocation9] sm:$0xff]
        %v769 = vld [vmem:[#allocation9 + $0x8] sm:$0xff]
        %v770 = vld [vmem:[#allocation9 + $0x10] sm:$0xff]
        %v771 = vld [vmem:[#allocation9 + $0x18] sm:$0xff]
        %v772 = vld [vmem:[#allocation9 + $0x20] sm:$0xff]
        %v773 = vld [vmem:[#allocation9 + $0x28] sm:$0xff]
        %v774 = vld [vmem:[#allocation9 + $0x30] sm:$0xff]
        %v775 = vld [vmem:[#allocation9 + $0x38] sm:$0xff]
        %v776 = vld [vmem:[#allocation9 + $0x40] sm:$0xff]
        %v777 = vld [vmem:[#allocation9 + $0x48] sm:$0xff]
        %v778 = vld [vmem:[#allocation9 + $0x50] sm:$0xff]
        %v779 = vld [vmem:[#allocation9 + $0x58] sm:$0xff]
        %v780 = vld [vmem:[#allocation9 + $0x60] sm:$0xff]
        %v781 = vld [vmem:[#allocation9 + $0x68] sm:$0xff]
        %v782 = vld [vmem:[#allocation9 + $0x70] sm:$0xff]
        %v783 = vld [vmem:[#allocation9 + $0x78] sm:$0xff]
        %784 = vmatpush.msra.mxu0 %v783
        %785 = vmatpush.msra.mxu0 %v782
        %786 = vmatpush.msra.mxu0 %v781
        %787 = vmatpush.msra.mxu0 %v780
        %788 = vmatpush.msra.mxu0 %v779
        %789 = vmatpush.msra.mxu0 %v778
        %790 = vmatpush.msra.mxu0 %v777
        %791 = vmatpush.msra.mxu0 %v776
        %792 = vmatpush.msra.mxu0 %v775
        %793 = vmatpush.msra.mxu0 %v774
        %794 = vmatpush.msra.mxu0 %v773
        %795 = vmatpush.msra.mxu0 %v772
        %796 = vmatpush.msra.mxu0 %v771
        %797 = vmatpush.msra.mxu0 %v770
        %798 = vmatpush.msra.mxu0 %v769
        %799 = vmatpush.msra.mxu0 %v768
        %800 = vmatmul.f32.gmra.mxu0 %v764
        %v801 = vpop.f32.mrf.mxu0
        %v802 = vadd.f32 0.0, %v801
        %803 = vmatmul.f32.gmra.mxu0 %v765
        %v804 = vpop.f32.mrf.mxu0
        %v805 = vadd.f32 0.0, %v804
        %806 = vmatmul.f32.gmra.mxu0 %v766
        %v807 = vpop.f32.mrf.mxu0
        %v808 = vadd.f32 0.0, %v807
        %809 = vmatmul.f32.gmra.mxu0 %v767
        %v810 = vpop.f32.mrf.mxu0
        %v811 = vadd.f32 0.0, %v810
        %812 = vdwg.mxu0
        %v813 = vrsqrt.pop %v802
        %v814 = vmul.f32 %v813, %v802
        %v815 = vmul.f32 %v814, %v813
        %v816 = vmul.f32 0.5, %v815
        %v817 = vsub.f32 1.5, %v816
        %v818 = vmul.f32 %v813, %v817
        %vm819 = vweird.f32 %v802
        %vm820 = vweird.f32 %v813
        %vm821 = vmor %vm819, %vm820
        %v822 = vsel %vm821, %v813, %v818
        %v823 = vrsqrt.pop %v805
        %v824 = vmul.f32 %v823, %v805
        %v825 = vmul.f32 %v824, %v823
        %v826 = vmul.f32 0.5, %v825
        %v827 = vsub.f32 1.5, %v826
        %v828 = vmul.f32 %v823, %v827
        %vm829 = vweird.f32 %v805
        %vm830 = vweird.f32 %v823
        %vm831 = vmor %vm829, %vm830
        %v832 = vsel %vm831, %v823, %v828
        %v833 = vrsqrt.pop %v808
        %v834 = vmul.f32 %v833, %v808
        %v835 = vmul.f32 %v834, %v833
        %v836 = vmul.f32 0.5, %v835
        %v837 = vsub.f32 1.5, %v836
        %v838 = vmul.f32 %v833, %v837
        %vm839 = vweird.f32 %v808
        %vm840 = vweird.f32 %v833
        %vm841 = vmor %vm839, %vm840
        %v842 = vsel %vm841, %v833, %v838
        %v843 = vrsqrt.pop %v811
        %v844 = vmul.f32 %v843, %v811
        %v845 = vmul.f32 %v844, %v843
        %v846 = vmul.f32 0.5, %v845
        %v847 = vsub.f32 1.5, %v846
        %v848 = vmul.f32 %v843, %v847
        %vm849 = vweird.f32 %v811
        %vm850 = vweird.f32 %v843
        %vm851 = vmor %vm849, %vm850
        %v852 = vsel %vm851, %v843, %v848
        %v853 = vld [vmem:[#allocation11] sm:$0xff]
        %v854 = vld [vmem:[#allocation11 + $0x8] sm:$0xff]
        %v855 = vld [vmem:[#allocation11 + $0x10] sm:$0xff]
        %v856 = vld [vmem:[#allocation11 + $0x18] sm:$0xff]
        %v857 = vmul.f32 %v822, %v760
        %v858 = vmul.f32 %v832, %v761
        %v859 = vmul.f32 %v842, %v762
        %v860 = vmul.f32 %v852, %v763
        %v862 = vsel %vm693, %v853, 0
        %v865 = vsel %vm693, %v854, 0
        %v868 = vsel %vm693, %v855, 0
        %v871 = vsel %vm693, %v856, 0
        %873 = vmatpush.msra.mxu0 0.0
        %874 = vmatpush.msra.mxu0 0.0
        %875 = vmatpush.msra.mxu0 0.0
        %876 = vmatpush.msra.mxu0 0.0
        %877 = vmatpush.msra.mxu0 0.0
        %878 = vmatpush.msra.mxu0 0.0
        %879 = vmatpush.msra.mxu0 0.0
        %880 = vmatpush.msra.mxu0 0.0
        %881 = vmatpush.msra.mxu0 0.0
        %882 = vmatpush.msra.mxu0 0.0
        %883 = vmatpush.msra.mxu0 0.0
        %884 = vmatpush.msra.mxu0 0.0
        %885 = vmatpush.msra.mxu0 %v860
        %886 = vmatpush.msra.mxu0 %v859
        %887 = vmatpush.msra.mxu0 %v858
        %888 = vmatpush.msra.mxu0 %v857
        %889 = vmatmul.f32.gmra.mxu0 %v862
        %v890 = vpop.f32.mrf.mxu0
        %v891 = vadd.f32 0.0, %v890
        %892 = vmatmul.f32.gmra.mxu0 %v865
        %v893 = vpop.f32.mrf.mxu0
        %v894 = vadd.f32 0.0, %v893
        %895 = vmatmul.f32.gmra.mxu0 %v868
        %v896 = vpop.f32.mrf.mxu0
        %v897 = vadd.f32 0.0, %v896
        %898 = vmatmul.f32.gmra.mxu0 %v871
        %v899 = vpop.f32.mrf.mxu0
        %v900 = vadd.f32 0.0, %v899
        %901 = vdwg.mxu0
        %v902 = vmul.f32 %v764, %v822
        %v903 = vmul.f32 %v765, %v832
        %v904 = vmul.f32 %v766, %v842
        %v905 = vmul.f32 %v767, %v852
        %v906 = vmul.f32 %v902, %v891
        %v907 = vmul.f32 %v903, %v894
        %v908 = vmul.f32 %v904, %v897
        %v909 = vmul.f32 %v905, %v900
        %910 = vst [vmem:[%s490] sm:$0xff] %v906
        %911 = vst [vmem:[%s490 + $0x8] sm:$0xff] %v907
        %912 = vst [vmem:[%s490 + $0x10] sm:$0xff] %v908
        %913 = vst [vmem:[%s490 + $0x18] sm:$0xff] %v909
        %s914 = sand.u32 %s235, 1
        %s915 = scalar_lea.sflag [#allocation5], %s914
        %s916 = sand.u32 %s235, 1
        %s917 = smul.addr %s916, 32
        %s918 = scalar_lea.vmem [#allocation16], %s917
        // Predicated region
        $region89: #{tpu_custom_call.1} parent=55 // pred_check
          %p919 = pneg %p245
        $region90: #{tpu_custom_call.1} parent=55 // pred_check_branch
          %921 = sbr.rel (%p919) target = $region92
        $region91: #{tpu_custom_call.1} parent=55 // pred_region
          %s922 = smul.u32 4, %s28
          %924 = vsyncadd %s915, 0
          %s925 = smul.addr %s922, 8
          %s926 = scalar_lea.hbm %s9, %s925
          %s927 = sshll.u32 %s918, 4
          %s928 = int_to_ptr.vmem [resolvable:$true] %s927
          %s929 = sshll.u32 %s926, 4
          %s930 = int_to_ptr.hbm [resolvable:$true] %s929
          %935 = dma.vmem_to_hbm [thread:$0]  %s928, 512, %s930, %s915, 128, 128, 8
        $region92: #{tpu_custom_call.1} parent=55 // pred_fallthru
          _
      $region56: #{tpu_custom_call.1} parent=5 // pred_fallthru
        _
      %p936 = scmp.le.s32.totalorder 2, %s23
      // Predicated region
      $region93: #{tpu_custom_call.1} parent=5 // pred_check
        %p937 = pneg %p936
      $region94: #{tpu_custom_call.1} parent=5 // pred_check_branch
        %939 = sbr.rel (%p937) target = $region96
      $region95: #{tpu_custom_call.1} parent=5 // pred_region
        %s940 = ssub.s32 %s23, 2
        // Predicated region
        $region97: #{tpu_custom_call.1} parent=95 // pred_check
          %p941 = pneg %p251
        $region98: #{tpu_custom_call.1} parent=95 // pred_check_branch
          %943 = sbr.rel (%p941) target = $region100
        $region99: #{tpu_custom_call.1} parent=95 // pred_region
          %s944 = sand.u32 %s236, 1
          %s945 = scalar_lea.sflag [#allocation5], %s944
          %s946 = sand.u32 %s236, 1
          %s947 = smul.addr %s946, 32
          %s948 = scalar_lea.vmem [#allocation16], %s947
          %950 = dma.done %s945, 512
        $region100: #{tpu_custom_call.1} parent=95 // pred_fallthru
          _
      $region96: #{tpu_custom_call.1} parent=5 // pred_fallthru
        _
    $region6: #{tpu_custom_call.1} parent=1 // loop_footer
      %s27 = sadd.s32 1, %s23
    $region7: #{tpu_custom_call.1} parent=1 // loop_footer_branch
      %22 = sbr.rel target = $region3
    $region8: #{tpu_custom_call.1} parent=1 // loop_exit
      _
    %951 = vsyncpa [#allocation4], 1
    %s952 = scalar_lea.sflag [#allocation4], 1
    %953 = vsyncpa %s952, 1
    %954 = vsyncpa [#allocation7], 1
    %955 = vsyncpa [#allocation10], 1
    %956 = vsyncpa [#allocation13], 1
    %957 = vsyncpa [#allocation5], 1
    %s958 = scalar_lea.sflag [#allocation5], 1
    %959 = vsyncpa %s958, 1

</llo_original>
